<compile_context>
chip_gen: v7x
topology: tpu7x:2x2x1
jax: 0.10.0
libtpu: 0.0.40
codegen_flags: <defaults>
</compile_context>

<pallas_src>
import functools

import jax
import jax.numpy as jnp
from jax import lax
from jax.experimental import pallas as pl
from jax.experimental.pallas import tpu as pltpu

_LANES = 128
_CHUNK_ROWS = 1024            # in-kernel compute chunk (bounds VMEM temporaries)
_MAX_ROW_TILE = 8192          # 8192 x 128 x 4B = 4 MiB per f32 DMA block
_EPS = 1e-7
_THRESHOLD = 0.5


@functools.lru_cache(maxsize=1)
def _tensorcores_per_chip():
    """Best-effort TensorCore-per-chip count (2 only on v7x-class chips)."""
    try:
        info = pltpu.get_tpu_info()
        for name in ("tensorcores_per_chip", "num_tensorcores_per_chip",
                     "cores_per_chip", "num_cores_per_chip"):
            v = getattr(info, name, None)
            if isinstance(v, int) and 1 <= v <= 8:
                return v
    except Exception:
        pass
    try:
        kind = jax.devices()[0].device_kind.lower()
        if "v7" in kind or "tpu7" in kind:
            return 2
    except Exception:
        pass
    return 1


def _native_threshold_ok(dtype, threshold):
    """Compare in the input dtype iff it is float and represents threshold exactly."""
    try:
        dt = jnp.dtype(dtype)
        if not jnp.issubdtype(dt, jnp.floating):
            return False
        return float(jnp.asarray(float(threshold), dt)) == float(threshold)
    except Exception:
        return False


def _recall_sums_kernel(pr_ref, gt_ref, tp_out, gt_out, *,
                        rows, row_tile, n_inner, first_masked, needs_mask,
                        threshold, native_cmp):
    c = pl.program_id(0)
    t = pl.program_id(1)
    g = c * n_inner + t                      # global tile index

    @pl.when(t == 0)
    def _init():
        tp_out[...] = jnp.zeros_like(tp_out)
        gt_out[...] = jnp.zeros_like(gt_out)

    full_chunks = row_tile // _CHUNK_ROWS
    rem_rows = row_tile - full_chunks * _CHUNK_ROWS

    def accumulate(offset, nrows, masked):
        pr = pr_ref[pl.ds(offset, nrows), :]
        if native_cmp:
            pred = pr > jnp.asarray(threshold, dtype=pr.dtype)
        else:
            pred = pr.astype(jnp.float32) > jnp.float32(threshold)
        gt = gt_ref[pl.ds(offset, nrows), :].astype(jnp.float32)
        if masked:
            # Zero rows past the real extent (partial edge tile / clamped phantom
            # tile).  Zeroing gt kills both the tp and the gt contributions.
            row_ids = lax.broadcasted_iota(jnp.int32, (nrows, _LANES), 0)
            gt = jnp.where(row_ids + (g * row_tile + offset) < rows, gt, 0.0)
        tp = jnp.where(pred, gt, 0.0)
        if nrows % 8 == 0:
            # Fold row groups onto the resident (8,128) accumulators: pure VPU.
            tp_out[...] += tp.reshape(-1, 8, _LANES).sum(axis=0)
            gt_out[...] += gt.reshape(-1, 8, _LANES).sum(axis=0)
        else:
            # Full-extent block whose row count is not a multiple of 8.
            tp_out[0:1, :] += tp.sum(axis=0, keepdims=True)
            gt_out[0:1, :] += gt.sum(axis=0, keepdims=True)

    def run(masked):
        if full_chunks > 0:
            def chunk_body(s, carry):
                off = pl.multiple_of(s * _CHUNK_ROWS, _CHUNK_ROWS)
                accumulate(off, _CHUNK_ROWS, masked)
                return carry
            lax.fori_loop(0, full_chunks, chunk_body, 0)
        if rem_rows > 0:
            accumulate(full_chunks * _CHUNK_ROWS, rem_rows, masked)

    if needs_mask:
        # Only the tile(s) straddling `rows` pay for the mask.
        @pl.when(g < first_masked)
        def _interior():
            run(False)

        @pl.when(g >= first_masked)
        def _edge():
            run(True)
    else:
        run(False)


def _choose_tiling(rows, num_cores):
    """Returns (row_tile, n_outer, n_inner, n_real_tiles)."""
    if rows <= _MAX_ROW_TILE:
        return rows, 1, 1, 1                     # single full-extent block
    row_tile = _MAX_ROW_TILE
    n_real = pl.cdiv(rows, row_tile)
    n_outer = 2 if (num_cores >= 2 and n_real >= 2) else 1
    if n_outer == 1:
        return row_tile, 1, n_real, n_real
    n_inner = pl.cdiv(n_real, n_outer)
    if n_outer * n_inner != n_real:
        # Shrink the tile so both cores get exactly n_inner real tiles (no
        # phantom re-read tile); keep it a multiple of the in-kernel chunk.
        n_total = n_outer * n_inner
        row_tile = min(_MAX_ROW_TILE,
                       pl.cdiv(pl.cdiv(rows, n_total), _CHUNK_ROWS) * _CHUNK_ROWS)
        n_real = pl.cdiv(rows, row_tile)
        n_inner = pl.cdiv(n_real, n_outer)       # safety net if still uneven
    return row_tile, n_outer, n_inner, n_real


def _recall_sums(pr2d, gt2d, *, threshold, num_cores=None):
    rows = pr2d.shape[0]
    if num_cores is None:
        num_cores = _tensorcores_per_chip()

    row_tile, n_outer, n_inner, n_real = _choose_tiling(rows, num_cores)
    n_grid = n_outer * n_inner
    last_partial = (rows % row_tile) != 0
    first_masked = (n_real - 1) if last_partial else n_real
    needs_mask = first_masked < n_grid

    native_cmp = _native_threshold_ok(pr2d.dtype, threshold)

    def in_map(c, t):
        g = c * n_inner + t
        return (jnp.minimum(g, n_real - 1), 0)   # keep any phantom tile's DMA in-bounds

    kernel = functools.partial(
        _recall_sums_kernel,
        rows=rows, row_tile=row_tile, n_inner=n_inner,
        first_masked=first_masked, needs_mask=needs_mask,
        threshold=float(threshold), native_cmp=native_cmp)

    if n_outer >= 2:
        # v7x: make the 2-way split actually land on both TensorCores.
        dim_sem = (pltpu.CORE_PARALLEL, pltpu.ARBITRARY)
    else:
        dim_sem = ("arbitrary", "arbitrary")

    out_tp, out_gt = pl.pallas_call(
        kernel,
        out_shape=(
            jax.ShapeDtypeStruct((n_outer * 8, _LANES), jnp.float32),
            jax.ShapeDtypeStruct((n_outer * 8, _LANES), jnp.float32),
        ),
        grid_spec=pltpu.PrefetchScalarGridSpec(
            num_scalar_prefetch=0,
            grid=(n_outer, n_inner),
            in_specs=[
                pl.BlockSpec((row_tile, _LANES), in_map),
                pl.BlockSpec((row_tile, _LANES), in_map),
            ],
            out_specs=[
                pl.BlockSpec((8, _LANES), lambda c, t: (c, 0)),
                pl.BlockSpec((8, _LANES), lambda c, t: (c, 0)),
            ],
        ),
        compiler_params=pltpu.CompilerParams(
            dimension_semantics=dim_sem,
            vmem_limit_bytes=32 * 1024 * 1024,
        ),
    )(pr2d, gt2d)

    return jnp.sum(out_tp), jnp.sum(out_gt)


def recall_pallas(y_pr, y_gt, *, eps=_EPS, threshold=_THRESHOLD, num_cores=None):
    # TODO(synk): non-default activation (sigmoid/softmax/...) and
    # ignore_channels options of the PyTorch module are not implemented; the
    # module defaults (identity activation, all channels) are.
    assert y_pr.shape == y_gt.shape
    total = int(y_pr.size)

    # Keep inputs in their source dtype (bool/uint8/bf16/f32): HBM bytes are the
    # roofline; widening to f32 happens per chunk inside the kernel.
    pr_flat = y_pr.reshape(-1)
    gt_flat = y_gt.reshape(-1)

    rem = total % _LANES
    main = total - rem

    tp = jnp.float32(0.0)
    gt_sum = jnp.float32(0.0)

    if rem:
        # <128 ragged tail elements: tiny JAX reduction (cheaper than a padded copy).
        pr_t = pr_flat[main:].astype(jnp.float32)
        gt_t = gt_flat[main:].astype(jnp.float32)
        tp = tp + jnp.sum(jnp.where(pr_t > threshold, gt_t, 0.0))
        gt_sum = gt_sum + jnp.sum(gt_t)

    if main:
        rows = main // _LANES
        pr2d = (pr_flat[:main] if rem else pr_flat).reshape(rows, _LANES)
        gt2d = (gt_flat[:main] if rem else gt_flat).reshape(rows, _LANES)
        k_tp, k_gt = _recall_sums(pr2d, gt2d, threshold=threshold,
                                  num_cores=num_cores)
        tp = tp + k_tp
        gt_sum = gt_sum + k_gt

    # tp + fn == sum(gt).  f32 lane accumulators are exact up to ~2^24 counts
    # per (8,128) slot (~1.7e10 binary-gt elements) — ample for segmentation.
    return (tp + eps) / (gt_sum + eps)


def recall_ref(y_pr, y_gt, *, eps=_EPS, threshold=_THRESHOLD):
    pr = (y_pr.astype(jnp.float32) > threshold).astype(jnp.float32)
    gt = y_gt.astype(jnp.float32)
    tp = jnp.sum(gt * pr)
    fn = jnp.sum(gt) - tp
    return (tp + eps) / (tp + fn + eps)


if __name__ == "__main__":
    key = jax.random.PRNGKey(0)
    k1, k2 = jax.random.split(key)
    # NCHW, matching the PyTorch module's expected segmentation inputs.
    y_pr = jax.random.uniform(k1, (2, 4, 16, 16), dtype=jnp.float32)
    y_gt = (jax.random.uniform(k2, (2, 4, 16, 16), dtype=jnp.float32) > 0.5).astype(
        jnp.float32
    )

    score = recall_pallas(y_pr, y_gt)
    jax.block_until_ready(score)

    ref = recall_ref(y_pr, y_gt)
    assert jnp.allclose(score, ref, atol=1e-6, rtol=1e-6), (score, ref)
    print("KERNEL_OK")
</pallas_src>

<mosaic_0001>
module attributes {stable_mosaic.version = 11 : i64} {
  func.func @_recall_sums_kernel(%arg0: i32, %arg1: i32, %arg2: memref<16x128xf32, #tpu.memory_space<vmem>>, %arg3: memref<16x128xf32, #tpu.memory_space<vmem>>, %arg4: memref<8x128xf32, #tpu.memory_space<vmem>>, %arg5: memref<8x128xf32, #tpu.memory_space<vmem>>) attributes {dimension_semantics = [#tpu.dimension_semantics<arbitrary>, #tpu.dimension_semantics<arbitrary>], iteration_bounds = array<i64: 1, 1>, scalar_prefetch = 0 : i64, scratch_operands = 0 : i64, tpu.core_type = #tpu.core_type<tc>, window_params = [{transform_indices = @transform_0, window_bounds = array<i64: 16, 128>}, {transform_indices = @transform_1, window_bounds = array<i64: 16, 128>}, {transform_indices = @transform_2, window_bounds = array<i64: 8, 128>}, {transform_indices = @transform_3, window_bounds = array<i64: 8, 128>}]} {
    %c0_i32 = arith.constant 0 : i32
    %0 = arith.cmpi eq, %arg1, %c0_i32 : i32
    %1 = arith.extui %0 : i1 to i32
    %c0_i32_0 = arith.constant 0 : i32
    %2 = arith.cmpi ne, %1, %c0_i32_0 : i32
    scf.if %2 {
      %cst_15 = arith.constant 0.000000e+00 : f32
      %19 = vector.broadcast %cst_15 : f32 to vector<8x128xf32>
      %c0_16 = arith.constant 0 : index
      %c0_17 = arith.constant 0 : index
      %20 = vector.load %arg4[%c0_16, %c0_17] : memref<8x128xf32, #tpu.memory_space<vmem>>, vector<8x128xf32>
      tpu.vector_store %arg4[%c0_16, %c0_17], %19 {strides = array<i32>} : memref<8x128xf32, #tpu.memory_space<vmem>>, vector<8x128xf32>,
      %cst_18 = arith.constant 0.000000e+00 : f32
      %21 = vector.broadcast %cst_18 : f32 to vector<8x128xf32>
      %c0_19 = arith.constant 0 : index
      %c0_20 = arith.constant 0 : index
      %22 = vector.load %arg5[%c0_19, %c0_20] : memref<8x128xf32, #tpu.memory_space<vmem>>, vector<8x128xf32>
      tpu.vector_store %arg5[%c0_19, %c0_20], %21 {strides = array<i32>} : memref<8x128xf32, #tpu.memory_space<vmem>>, vector<8x128xf32>,
    } else {
    }
    %c0 = arith.constant 0 : index
    %c0_1 = arith.constant 0 : index
    %3 = vector.load %arg2[%c0, %c0_1] : memref<16x128xf32, #tpu.memory_space<vmem>>, vector<16x128xf32>
    %cst = arith.constant 5.000000e-01 : f32
    %4 = vector.broadcast %cst : f32 to vector<16x128xf32>
    %5 = arith.cmpf ogt, %3, %4 : vector<16x128xf32>
    %c0_2 = arith.constant 0 : index
    %c0_3 = arith.constant 0 : index
    %6 = vector.load %arg3[%c0_2, %c0_3] : memref<16x128xf32, #tpu.memory_space<vmem>>, vector<16x128xf32>
    %cst_4 = arith.constant 0.000000e+00 : f32
    %7 = vector.broadcast %cst_4 : f32 to vector<16x128xf32>
    %8 = arith.select %5, %6, %7 : vector<16x128xi1>, vector<16x128xf32>
    %c0_5 = arith.constant 0 : index
    %c0_6 = arith.constant 0 : index
    %9 = vector.load %arg4[%c0_5, %c0_6] : memref<8x128xf32, #tpu.memory_space<vmem>>, vector<8x128xf32>
    %10 = vector.shape_cast %8 : vector<16x128xf32> to vector<2x8x128xf32>
    %cst_7 = arith.constant dense<0.000000e+00> : vector<8x128xf32>
    %11 = vector.multi_reduction <add>, %10, %cst_7 [0] : vector<2x8x128xf32> to vector<8x128xf32>
    %12 = arith.addf %9, %11 : vector<8x128xf32>
    %c0_8 = arith.constant 0 : index
    %c0_9 = arith.constant 0 : index
    %13 = vector.load %arg4[%c0_8, %c0_9] : memref<8x128xf32, #tpu.memory_space<vmem>>, vector<8x128xf32>
    tpu.vector_store %arg4[%c0_8, %c0_9], %12 {strides = array<i32>} : memref<8x128xf32, #tpu.memory_space<vmem>>, vector<8x128xf32>,
    %c0_10 = arith.constant 0 : index
    %c0_11 = arith.constant 0 : index
    %14 = vector.load %arg5[%c0_10, %c0_11] : memref<8x128xf32, #tpu.memory_space<vmem>>, vector<8x128xf32>
    %15 = vector.shape_cast %6 : vector<16x128xf32> to vector<2x8x128xf32>
    %cst_12 = arith.constant dense<0.000000e+00> : vector<8x128xf32>
    %16 = vector.multi_reduction <add>, %15, %cst_12 [0] : vector<2x8x128xf32> to vector<8x128xf32>
    %17 = arith.addf %14, %16 : vector<8x128xf32>
    %c0_13 = arith.constant 0 : index
    %c0_14 = arith.constant 0 : index
    %18 = vector.load %arg5[%c0_13, %c0_14] : memref<8x128xf32, #tpu.memory_space<vmem>>, vector<8x128xf32>
    tpu.vector_store %arg5[%c0_13, %c0_14], %17 {strides = array<i32>} : memref<8x128xf32, #tpu.memory_space<vmem>>, vector<8x128xf32>,
    return
  }
  func.func @transform_0(%arg0: i32, %arg1: i32) -> (i32, i32) {
    %c1_i32 = arith.constant 1 : i32
    %0 = arith.muli %arg0, %c1_i32 : i32
    %1 = arith.addi %0, %arg1 : i32
    %c0_i32 = arith.constant 0 : i32
    %2 = arith.minsi %1, %c0_i32 : i32
    %c0_i32_0 = arith.constant 0 : i32
    %c0_i32_1 = arith.constant 0 : i32
    return %2, %c0_i32_0 : i32, i32
  }
  func.func @transform_1(%arg0: i32, %arg1: i32) -> (i32, i32) {
    %c1_i32 = arith.constant 1 : i32
    %0 = arith.muli %arg0, %c1_i32 : i32
    %1 = arith.addi %0, %arg1 : i32
    %c0_i32 = arith.constant 0 : i32
    %2 = arith.minsi %1, %c0_i32 : i32
    %c0_i32_0 = arith.constant 0 : i32
    %c0_i32_1 = arith.constant 0 : i32
    return %2, %c0_i32_0 : i32, i32
  }
  func.func @transform_2(%arg0: i32, %arg1: i32) -> (i32, i32) {
    %c0_i32 = arith.constant 0 : i32
    %c0_i32_0 = arith.constant 0 : i32
    return %arg0, %c0_i32 : i32, i32
  }
  func.func @transform_3(%arg0: i32, %arg1: i32) -> (i32, i32) {
    %c0_i32 = arith.constant 0 : i32
    %c0_i32_0 = arith.constant 0 : i32
    return %arg0, %c0_i32 : i32, i32
  }
}

</mosaic_0001>

<llo_original>
// kernel: tpu_custom_call.1
$region0: #{tpu_custom_call.1}
  #allocation0 [shape = 'u32[]', space=smem, size = 0x4, offset = 0x4, fixed_abs, tag = 'smem constant byte address 0x4 - core index']
  #allocation1 [shape = 'u32[144,128]{1,0:T(1,128)}', space=vmem, size = 0x12000, scoped, tag = 'internal scratch']
  %s0 = inlined_call_operand.hbm [shape: f32[16,128], index: 0, kind: input, shape index: {}]
  %s1 = inlined_call_operand.hbm [shape: f32[16,128], index: 1, kind: input, shape index: {}]
  %s2 = inlined_call_operand.hbm [shape: f32[8,128], index: 2, kind: output, shape index: {0}]
  %s3 = inlined_call_operand.hbm [shape: f32[8,128], index: 3, kind: output, shape index: {1}]
  %4 = xla_tuple %s2, %s3
  %s5 = sld [smem:[#allocation0]]
  $region38: #{tpu_custom_call.1} parent=0
    _
  %s7 = ssub.s32 1, %s5
  %s8 = scalar_select 0, %s7, %s5
  $region1: #{tpu_custom_call.1} parent=0
    #allocation2 [shape = 'u8[8192]{0}', space=vmem, size = 0x2000, scoped, tag = 'input window, operand 0, single buffered']
    #allocation3 [shape = 's32[1]{0}', space=sflag, size = 0x4, scoped, tag = 'scoped memory for tpu_custom_call.1']
    #allocation4 [shape = 's32[1]{0}', space=sflag, size = 0x4, scoped, tag = 'scoped memory for tpu_custom_call.1']
    #allocation5 [shape = 'u8[8192]{0}', space=vmem, size = 0x2000, scoped, tag = 'input window, operand 1, single buffered']
    #allocation6 [shape = 's32[1]{0}', space=sflag, size = 0x4, scoped, tag = 'scoped memory for tpu_custom_call.1']
    #allocation7 [shape = 'u8[4096]{0}', space=vmem, size = 0x1000, scoped, tag = 'output window, operand 0, single buffered']
    #allocation8 [shape = 'u8[4096]{0}', space=vmem, size = 0x1000, scoped, tag = 'output window, operand 1, single buffered']
    #allocation9 [shape = 's32[1]{0}', space=sflag, size = 0x4, scoped, tag = 'scoped memory for tpu_custom_call.1']
    %9 = vsyncpa [#allocation3], 0
    %10 = vsyncpa [#allocation6], 0
    %11 = vsyncpa [#allocation4], 0
    %12 = vsyncpa [#allocation9], 0
    // Predicated region
    $region2: #{tpu_custom_call.1} parent=1 // pred_check
      _
    $region3: #{tpu_custom_call.1} parent=1 // pred_check_branch
      %14 = sbr.rel (0) target = $region5
    $region4: #{tpu_custom_call.1} parent=1 // pred_region
      %s15 = sadd.s32 0, 0
      %p16 = scmp.lt.s32.totalorder %s15, 0
      %s17 = scalar_select %p16, %s15, 0
      %s18 = smul.u32 2, %s17
      %s20 = ssub.s32 256, 256
      %21 = vsyncadd [#allocation3], %s20
      %s22 = smul.addr %s18, 128
      %s23 = scalar_lea.hbm %s0, %s22
      %s24 = sshll.u32 [#allocation2], 4
      %s25 = int_to_ptr.vmem [resolvable:$true] %s24
      %30 = dma.hbm_to_vmem [thread:$0]  %s23, 256, %s25, [#allocation3], 128, 128, 8
    $region5: #{tpu_custom_call.1} parent=1 // pred_fallthru
      _
    // Predicated region
    $region6: #{tpu_custom_call.1} parent=1 // pred_check
      _
    $region7: #{tpu_custom_call.1} parent=1 // pred_check_branch
      %32 = sbr.rel (0) target = $region9
    $region8: #{tpu_custom_call.1} parent=1 // pred_region
      %s33 = sadd.s32 0, 0
      %p34 = scmp.lt.s32.totalorder %s33, 0
      %s35 = scalar_select %p34, %s33, 0
      %s36 = smul.u32 2, %s35
      %s38 = ssub.s32 256, 256
      %39 = vsyncadd [#allocation6], %s38
      %s40 = smul.addr %s36, 128
      %s41 = scalar_lea.hbm %s1, %s40
      %s42 = sshll.u32 [#allocation5], 4
      %s43 = int_to_ptr.vmem [resolvable:$true] %s42
      %48 = dma.hbm_to_vmem [thread:$0]  %s41, 256, %s43, [#allocation6], 128, 128, 8
    $region9: #{tpu_custom_call.1} parent=1 // pred_fallthru
      _
    // Predicated region
    $region10: #{tpu_custom_call.1} parent=1 // pred_check
      _
    $region11: #{tpu_custom_call.1} parent=1 // pred_check_branch
      %50 = sbr.rel (0) target = $region13
    $region12: #{tpu_custom_call.1} parent=1 // pred_region
      %51 = dma.done [#allocation3], 256
    $region13: #{tpu_custom_call.1} parent=1 // pred_fallthru
      _
    // Predicated region
    $region14: #{tpu_custom_call.1} parent=1 // pred_check
      _
    $region15: #{tpu_custom_call.1} parent=1 // pred_check_branch
      %53 = sbr.rel (0) target = $region17
    $region16: #{tpu_custom_call.1} parent=1 // pred_region
      %54 = dma.done [#allocation6], 256
    $region17: #{tpu_custom_call.1} parent=1 // pred_fallthru
      _
    %s55 = sadd.s32 0, 0
    %p56 = scmp.lt.s32.totalorder %s55, 0
    %s57 = scalar_select %p56, %s55, 0
    %s58 = smul.u32 2, %s57
    %s59 = sadd.s32 0, 0
    %p60 = scmp.lt.s32.totalorder %s59, 0
    %s61 = scalar_select %p60, %s59, 0
    %s62 = smul.u32 2, %s61
    %p63 = scmp.eq.s32.totalorder 0, 0
    // Predicated region
    $region18: #{tpu_custom_call.1} parent=1 // pred_check
      %p64 = pneg %p63
    $region19: #{tpu_custom_call.1} parent=1 // pred_check_branch
      %66 = sbr.rel (%p64) target = $region21
    $region20: #{tpu_custom_call.1} parent=1 // pred_region
      %67 = vst [vmem:[#allocation7] sm:$0xff] 0.0
      %68 = vst [vmem:[#allocation8] sm:$0xff] 0.0
    $region21: #{tpu_custom_call.1} parent=1 // pred_fallthru
      _
    %v69 = vld [vmem:[#allocation2] sm:$0xff]
    %v70 = vld [vmem:[#allocation2 + $0x8] sm:$0xff]
    %vm71 = vcmp.gt.f32.partialorder %v69, 0.5
    %vm72 = vcmp.gt.f32.partialorder %v70, 0.5
    %v73 = vld [vmem:[#allocation5] sm:$0xff]
    %v74 = vld [vmem:[#allocation5 + $0x8] sm:$0xff]
    %v75 = vsel %vm71, %v73, 0.0
    %v76 = vsel %vm72, %v74, 0.0
    %v77 = vld [vmem:[#allocation7] sm:$0xff]
    %v78 = vadd.f32 %v75, %v76
    %v79 = vadd.f32 %v77, %v78
    %80 = vst [vmem:[#allocation7] sm:$0xff] %v79
    %v81 = vld [vmem:[#allocation8] sm:$0xff]
    %v82 = vadd.f32 %v73, %v74
    %v83 = vadd.f32 %v81, %v82
    %84 = vst [vmem:[#allocation8] sm:$0xff] %v83
    // Predicated region
    $region22: #{tpu_custom_call.1} parent=1 // pred_check
      _
    $region23: #{tpu_custom_call.1} parent=1 // pred_check_branch
      %86 = sbr.rel (0) target = $region25
    $region24: #{tpu_custom_call.1} parent=1 // pred_region
      %s88 = ssub.s32 128, 128
      %89 = vsyncadd [#allocation4], %s88
      %s91 = sshll.u32 [#allocation7], 4
      %s92 = int_to_ptr.vmem [resolvable:$true] %s91
      %94 = dma.vmem_to_hbm [thread:$0]  %s92, 128, %s2, [#allocation4]
    $region25: #{tpu_custom_call.1} parent=1 // pred_fallthru
      _
    // Predicated region
    $region26: #{tpu_custom_call.1} parent=1 // pred_check
      _
    $region27: #{tpu_custom_call.1} parent=1 // pred_check_branch
      %96 = sbr.rel (0) target = $region29
    $region28: #{tpu_custom_call.1} parent=1 // pred_region
      %s98 = ssub.s32 128, 128
      %99 = vsyncadd [#allocation9], %s98
      %s101 = sshll.u32 [#allocation8], 4
      %s102 = int_to_ptr.vmem [resolvable:$true] %s101
      %104 = dma.vmem_to_hbm [thread:$0]  %s102, 128, %s3, [#allocation9]
    $region29: #{tpu_custom_call.1} parent=1 // pred_fallthru
      _
    // Predicated region
    $region30: #{tpu_custom_call.1} parent=1 // pred_check
      _
    $region31: #{tpu_custom_call.1} parent=1 // pred_check_branch
      %106 = sbr.rel (0) target = $region33
    $region32: #{tpu_custom_call.1} parent=1 // pred_region
      %107 = dma.done [#allocation4], 128
    $region33: #{tpu_custom_call.1} parent=1 // pred_fallthru
      _
    // Predicated region
    $region34: #{tpu_custom_call.1} parent=1 // pred_check
      _
    $region35: #{tpu_custom_call.1} parent=1 // pred_check_branch
      %109 = sbr.rel (0) target = $region37
    $region36: #{tpu_custom_call.1} parent=1 // pred_region
      %110 = dma.done [#allocation9], 128
    $region37: #{tpu_custom_call.1} parent=1 // pred_fallthru
      _
    %111 = vsyncpa [#allocation3], 1
    %112 = vsyncpa [#allocation6], 1
    %113 = vsyncpa [#allocation4], 1
    %114 = vsyncpa [#allocation9], 1

</llo_original>
